<compile_context>
chip_gen: v7x
topology: tpu7x:2x2x1
jax: 0.10.0
libtpu: 0.0.40
codegen_flags: <defaults>
</compile_context>

<pallas_src>
import functools

import jax
import jax.numpy as jnp
from jax.experimental import pallas as pl
from jax.experimental.pallas import tpu as pltpu


# ------------------------------------------------------------------- fused model + postproc
def _fused_kernel(img_ref, a_ref, wb_ref, scale_ref, out_ref, px_ref, *, nc, batch):
    # img_ref   : (B, C, HW)      f32 images (cast to bf16 in-kernel, no wrapper copy)
    # a_ref     : (Q, C)          bf16  = queries @ w_embed.T        (D folded out)
    # wb_ref    : (C, HEAD)       bf16  = w_embed @ [w_cls|w_box|0]  (D folded out)
    # scale_ref : (B*Q, HEAD)     f32   per-image lane scale [1.. | w h w h | 0..]
    # out_ref   : (B*Q, HEAD)     f32   slab [sigmoid(logits) | xyxy*scale | 0-pad]
    # px_ref    : (B*Q, C)        bf16  VMEM scratch (attention-pooled features)
    q = a_ref.shape[0]
    head = out_ref.shape[-1]

    # per-image cross-attention pooling (softmax is over HW per image -> tiny static loop)
    for b in range(batch):
        x_b = img_ref[b].astype(jnp.bfloat16)                               # (C, HW)
        attn = jnp.dot(a_ref[...], x_b,
                       preferred_element_type=jnp.float32)                  # (Q, HW) f32
        attn = attn - jnp.max(attn, axis=-1, keepdims=True)
        p = jnp.exp(attn)
        p = p * pl.reciprocal(jnp.sum(p, axis=-1, keepdims=True), approx=True)
        px = jax.lax.dot_general(                                            # (Q, C) f32
            p.astype(jnp.bfloat16), x_b,
            dimension_numbers=(((1,), (1,)), ((), ())),                      # contract HW
            preferred_element_type=jnp.float32)
        px_ref[b * q:(b + 1) * q, :] = px.astype(jnp.bfloat16)

    # batched fused class+box head over all images: (B*Q, C) @ (C, HEAD)
    h = jnp.dot(px_ref[...], wb_ref[...], preferred_element_type=jnp.float32)
    # NOTE: synthetic head applies sigmoid to box lanes too; real RT-DETR decoder boxes
    # are already sigmoid-ed — drop the box-lane sigmoid when wiring real weights.
    s = jax.nn.sigmoid(h)              # scores at lanes [0, nc); cxcywh at [nc, nc+4)

    # lane masks built once per call (grid collapsed -> no per-image re-emission)
    lane = jax.lax.broadcasted_iota(jnp.int32, s.shape, 1)
    is_score = lane < nc
    is_xy1 = (lane >= nc) & (lane < nc + 2)

    # cxcywh -> xyxy with rolls (box lanes: [cx, cy, w, h] -> [x1, y1, x2, y2])
    s_p2 = pltpu.roll(s, shift=2, axis=1)          # s_p2[c] = s[c-2]
    s_m2 = pltpu.roll(s, shift=head - 2, axis=1)   # s_m2[c] = s[c+2]
    xyxy = jnp.where(is_xy1, s - 0.5 * s_m2, s_p2 + 0.5 * s)

    # scale_ref is 1 on score lanes, (w,h,w,h) on box lanes, 0 on pad lanes
    out_ref[...] = jnp.where(is_score, s, xyxy) * scale_ref[...]


def run_fused(images_cxhw, a, wb, scale, *, nc):
    B, C, HW = images_cxhw.shape
    Q = a.shape[0]
    HEAD = wb.shape[1]
    return pl.pallas_call(
        functools.partial(_fused_kernel, nc=nc, batch=B),
        out_shape=jax.ShapeDtypeStruct((B * Q, HEAD), jnp.float32),
        scratch_shapes=[pltpu.VMEM((B * Q, C), jnp.bfloat16)],
    )(images_cxhw, a, wb, scale)


# ------------------------------------------------------------------------------ full wrapper
@functools.partial(jax.jit, static_argnames=("num_top_queries",))
def model_wrapper_forward(images_nchw, orig_target_sizes, params, num_top_queries=4):
    """ModelWrapper.forward(images, orig_target_sizes) -> (labels, boxes, scores)."""
    B, C, H, W = images_nchw.shape
    HW = H * W
    NC = params["w_cls"].shape[1]
    Q = params["queries"].shape[0]
    HEAD = ((NC + 4 + 127) // 128) * 128

    # layout: NCHW -> (B, C, H*W) is a free view; keep original f32 dtype (cast in-kernel).
    x = images_nchw.reshape(B, C, HW)

    # algebraic weight folding (static weights; done once per call, trivially small):
    a = (params["queries"] @ params["w_embed"].T).astype(jnp.bfloat16)        # (Q, C)
    w_head = jnp.concatenate([params["w_cls"], params["w_box"]], axis=1)      # (D, NC+4)
    wb = params["w_embed"] @ w_head                                           # (C, NC+4)
    wb = jnp.pad(wb, ((0, 0), (0, HEAD - NC - 4))).astype(jnp.bfloat16)       # (C, HEAD)

    # per-image lane scale: 1 at score lanes, [w, h, w, h] at box lanes, 0 at pad lanes.
    # NOTE: orig_target_sizes assumed ordered (w, h) per image (RT-DETR deploy convention).
    sizes = orig_target_sizes.astype(jnp.float32)
    lane = jnp.arange(HEAD)
    wh = jnp.where((lane - NC) % 2 == 0, sizes[:, 0:1], sizes[:, 1:2])        # (B, HEAD)
    scale = jnp.where(lane < NC, 1.0,
                      jnp.where((lane >= NC) & (lane < NC + 4), wh, 0.0))     # (B, HEAD)
    scale = jnp.repeat(scale, Q, axis=0)                                      # (B*Q, HEAD)

    slab = run_fused(x, a, wb, scale, nc=NC).reshape(B, Q, HEAD)              # (B, Q, HEAD)

    scores_all = slab[..., :NC]           # sigmoid scores (B, Q, NC)
    bbox_xyxy = slab[..., NC:NC + 4]      # scaled xyxy boxes (B, Q, 4)

    # top-k over flattened (query, class) scores — glue in plain JAX.
    # TODO(synk): top_k / take_along_axis gather kept in JAX; a 4-iteration in-kernel
    # argmax epilogue is possible but not worth the lowering risk at this scale.
    flat = scores_all.reshape(B, -1)
    scores, index = jax.lax.top_k(flat, num_top_queries)
    labels = index % NC
    qindex = index // NC
    boxes = jnp.take_along_axis(bbox_xyxy, qindex[..., None], axis=1)
    return labels, boxes, scores


# ---------------------------------------------------------------------------------- __main__
if __name__ == "__main__":
    key = jax.random.PRNGKey(0)
    k_img, k_emb, k_q, k_cls, k_box = jax.random.split(key, 5)

    B, C, H, W = 2, 4, 16, 16     # images: [2, 4, 16, 16]
    D, Q, NC = 32, 16, 8          # hidden, num queries, num classes
    NUM_TOP = 4

    images = jax.random.normal(k_img, (B, C, H, W), dtype=jnp.float32)
    orig_target_sizes = jnp.array([[640.0, 480.0], [320.0, 320.0]], dtype=jnp.float32)

    params = {
        "w_embed": jax.random.normal(k_emb, (C, D), dtype=jnp.float32) * 0.1,
        "queries": jax.random.normal(k_q, (Q, D), dtype=jnp.float32) * 0.1,
        "w_cls":   jax.random.normal(k_cls, (D, NC), dtype=jnp.float32) * 0.1,
        "w_box":   jax.random.normal(k_box, (D, 4), dtype=jnp.float32) * 0.1,
    }

    labels, boxes, scores = model_wrapper_forward(
        images, orig_target_sizes, params, num_top_queries=NUM_TOP)
    jax.block_until_ready((labels, boxes, scores))

    assert labels.shape == (B, NUM_TOP)
    assert boxes.shape == (B, NUM_TOP, 4)
    assert scores.shape == (B, NUM_TOP)
    assert bool(jnp.all(jnp.isfinite(boxes))) and bool(jnp.all(jnp.isfinite(scores)))
    print("KERNEL_OK")
</pallas_src>

<mosaic_0001>
module attributes {stable_mosaic.version = 11 : i64} {
  func.func @_fused_kernel(%arg0: memref<2x4x256xf32, #tpu.memory_space<vmem>>, %arg1: memref<16x4xbf16, #tpu.memory_space<vmem>>, %arg2: memref<4x128xbf16, #tpu.memory_space<vmem>>, %arg3: memref<32x128xf32, #tpu.memory_space<vmem>>, %arg4: memref<32x128xf32, #tpu.memory_space<vmem>>, %arg5: memref<32x4xbf16, #tpu.memory_space<vmem>>) attributes {dimension_semantics = [], scalar_prefetch = 0 : i64, scratch_operands = 1 : i64, tpu.core_type = #tpu.core_type<tc>} {
    %c0 = arith.constant 0 : index
    %c0_0 = arith.constant 0 : index
    %c0_1 = arith.constant 0 : index
    %0 = vector.load %arg0[%c0, %c0_0, %c0_1] : memref<2x4x256xf32, #tpu.memory_space<vmem>>, vector<1x4x256xf32>
    %1 = vector.shape_cast %0 : vector<1x4x256xf32> to vector<4x256xf32>
    %2 = arith.truncf %1 : vector<4x256xf32> to vector<4x256xbf16>
    %c0_2 = arith.constant 0 : index
    %c0_3 = arith.constant 0 : index
    %3 = vector.load %arg1[%c0_2, %c0_3] : memref<16x4xbf16, #tpu.memory_space<vmem>>, vector<16x4xbf16>
    %cst = arith.constant dense<0.000000e+00> : vector<16x256xf32>
    %4 = tpu.matmul %3, %2, %cst {dimension_numbers = #tpu.dot_dimension_numbers<[1], [0], [0], [1], [0, 0, 1, 1], [], []>} : vector<16x4xbf16>, vector<4x256xbf16>, vector<16x256xf32> -> vector<16x256xf32>
    %cst_4 = arith.constant dense<0xFF800000> : vector<16xf32>
    %5 = vector.multi_reduction <maximumf>, %4, %cst_4 [1] : vector<16x256xf32> to vector<16xf32>
    %6 = vector.shape_cast %5 : vector<16xf32> to vector<16x1xf32>
    %7 = vector.broadcast %6 : vector<16x1xf32> to vector<16x256xf32>
    %8 = arith.subf %4, %7 : vector<16x256xf32>
    %9 = math.exp %8 : vector<16x256xf32>
    %cst_5 = arith.constant dense<0.000000e+00> : vector<16xf32>
    %10 = vector.multi_reduction <add>, %9, %cst_5 [1] : vector<16x256xf32> to vector<16xf32>
    %11 = vector.shape_cast %10 : vector<16xf32> to vector<16x1xf32>
    %12 = tpu.reciprocal %11 {approx = true} : vector<16x1xf32> -> vector<16x1xf32>
    %13 = vector.broadcast %12 : vector<16x1xf32> to vector<16x256xf32>
    %14 = arith.mulf %9, %13 : vector<16x256xf32>
    %15 = arith.truncf %14 : vector<16x256xf32> to vector<16x256xbf16>
    %cst_6 = arith.constant dense<0.000000e+00> : vector<16x4xf32>
    %16 = tpu.matmul %15, %2, %cst_6 {dimension_numbers = #tpu.dot_dimension_numbers<[1], [1], [0], [0], [0, 0, 1, 0], [], []>} : vector<16x256xbf16>, vector<4x256xbf16>, vector<16x4xf32> -> vector<16x4xf32>
    %17 = arith.truncf %16 : vector<16x4xf32> to vector<16x4xbf16>
    %c0_7 = arith.constant 0 : index
    %c0_8 = arith.constant 0 : index
    %18 = vector.load %arg5[%c0_7, %c0_8] : memref<32x4xbf16, #tpu.memory_space<vmem>>, vector<16x4xbf16>
    tpu.vector_store %arg5[%c0_7, %c0_8], %17 {strides = array<i32>} : memref<32x4xbf16, #tpu.memory_space<vmem>>, vector<16x4xbf16>,
    %c1 = arith.constant 1 : index
    %c0_9 = arith.constant 0 : index
    %c0_10 = arith.constant 0 : index
    %19 = vector.load %arg0[%c1, %c0_9, %c0_10] : memref<2x4x256xf32, #tpu.memory_space<vmem>>, vector<1x4x256xf32>
    %20 = vector.shape_cast %19 : vector<1x4x256xf32> to vector<4x256xf32>
    %21 = arith.truncf %20 : vector<4x256xf32> to vector<4x256xbf16>
    %c0_11 = arith.constant 0 : index
    %c0_12 = arith.constant 0 : index
    %22 = vector.load %arg1[%c0_11, %c0_12] : memref<16x4xbf16, #tpu.memory_space<vmem>>, vector<16x4xbf16>
    %cst_13 = arith.constant dense<0.000000e+00> : vector<16x256xf32>
    %23 = tpu.matmul %22, %21, %cst_13 {dimension_numbers = #tpu.dot_dimension_numbers<[1], [0], [0], [1], [0, 0, 1, 1], [], []>} : vector<16x4xbf16>, vector<4x256xbf16>, vector<16x256xf32> -> vector<16x256xf32>
    %cst_14 = arith.constant dense<0xFF800000> : vector<16xf32>
    %24 = vector.multi_reduction <maximumf>, %23, %cst_14 [1] : vector<16x256xf32> to vector<16xf32>
    %25 = vector.shape_cast %24 : vector<16xf32> to vector<16x1xf32>
    %26 = vector.broadcast %25 : vector<16x1xf32> to vector<16x256xf32>
    %27 = arith.subf %23, %26 : vector<16x256xf32>
    %28 = math.exp %27 : vector<16x256xf32>
    %cst_15 = arith.constant dense<0.000000e+00> : vector<16xf32>
    %29 = vector.multi_reduction <add>, %28, %cst_15 [1] : vector<16x256xf32> to vector<16xf32>
    %30 = vector.shape_cast %29 : vector<16xf32> to vector<16x1xf32>
    %31 = tpu.reciprocal %30 {approx = true} : vector<16x1xf32> -> vector<16x1xf32>
    %32 = vector.broadcast %31 : vector<16x1xf32> to vector<16x256xf32>
    %33 = arith.mulf %28, %32 : vector<16x256xf32>
    %34 = arith.truncf %33 : vector<16x256xf32> to vector<16x256xbf16>
    %cst_16 = arith.constant dense<0.000000e+00> : vector<16x4xf32>
    %35 = tpu.matmul %34, %21, %cst_16 {dimension_numbers = #tpu.dot_dimension_numbers<[1], [1], [0], [0], [0, 0, 1, 0], [], []>} : vector<16x256xbf16>, vector<4x256xbf16>, vector<16x4xf32> -> vector<16x4xf32>
    %36 = arith.truncf %35 : vector<16x4xf32> to vector<16x4xbf16>
    %c16 = arith.constant 16 : index
    %c0_17 = arith.constant 0 : index
    %37 = vector.load %arg5[%c16, %c0_17] : memref<32x4xbf16, #tpu.memory_space<vmem>>, vector<16x4xbf16>
    tpu.vector_store %arg5[%c16, %c0_17], %36 {strides = array<i32>} : memref<32x4xbf16, #tpu.memory_space<vmem>>, vector<16x4xbf16>,
    %c0_18 = arith.constant 0 : index
    %c0_19 = arith.constant 0 : index
    %38 = vector.load %arg5[%c0_18, %c0_19] : memref<32x4xbf16, #tpu.memory_space<vmem>>, vector<32x4xbf16>
    %c0_20 = arith.constant 0 : index
    %c0_21 = arith.constant 0 : index
    %39 = vector.load %arg2[%c0_20, %c0_21] : memref<4x128xbf16, #tpu.memory_space<vmem>>, vector<4x128xbf16>
    %cst_22 = arith.constant dense<0.000000e+00> : vector<32x128xf32>
    %40 = tpu.matmul %38, %39, %cst_22 {dimension_numbers = #tpu.dot_dimension_numbers<[1], [0], [0], [1], [0, 0, 1, 1], [], []>} : vector<32x4xbf16>, vector<4x128xbf16>, vector<32x128xf32> -> vector<32x128xf32>
    %41 = arith.negf %40 : vector<32x128xf32>
    %42 = math.exp %41 : vector<32x128xf32>
    %cst_23 = arith.constant 1.000000e+00 : f32
    %43 = vector.broadcast %cst_23 : f32 to vector<32x128xf32>
    %44 = arith.addf %43, %42 : vector<32x128xf32>
    %45 = arith.divf %43, %44 : vector<32x128xf32>
    %46 = tpu.iota {dimensions = array<i32: 1>} : vector<32x128xi32>
    %c8_i32 = arith.constant 8 : i32
    %47 = vector.broadcast %c8_i32 : i32 to vector<32x128xi32>
    %48 = arith.cmpi slt, %46, %47 : vector<32x128xi32>
    %c8_i32_24 = arith.constant 8 : i32
    %49 = vector.broadcast %c8_i32_24 : i32 to vector<32x128xi32>
    %50 = arith.cmpi sge, %46, %49 : vector<32x128xi32>
    %c10_i32 = arith.constant 10 : i32
    %51 = vector.broadcast %c10_i32 : i32 to vector<32x128xi32>
    %52 = arith.cmpi slt, %46, %51 : vector<32x128xi32>
    %53 = arith.andi %50, %52 : vector<32x128xi1>
    %c2_i32 = arith.constant 2 : i32
    %54 = tpu.dynamic_rotate %45 by %c2_i32 dim 1 : vector<32x128xf32>, i32 -> vector<32x128xf32>
    %c126_i32 = arith.constant 126 : i32
    %55 = tpu.dynamic_rotate %45 by %c126_i32 dim 1 : vector<32x128xf32>, i32 -> vector<32x128xf32>
    %cst_25 = arith.constant 5.000000e-01 : f32
    %56 = vector.broadcast %cst_25 : f32 to vector<32x128xf32>
    %57 = arith.mulf %56, %55 : vector<32x128xf32>
    %58 = arith.subf %45, %57 : vector<32x128xf32>
    %cst_26 = arith.constant 5.000000e-01 : f32
    %59 = vector.broadcast %cst_26 : f32 to vector<32x128xf32>
    %60 = arith.mulf %59, %45 : vector<32x128xf32>
    %61 = arith.addf %54, %60 : vector<32x128xf32>
    %62 = arith.select %53, %58, %61 : vector<32x128xi1>, vector<32x128xf32>
    %63 = arith.select %48, %45, %62 : vector<32x128xi1>, vector<32x128xf32>
    %c0_27 = arith.constant 0 : index
    %c0_28 = arith.constant 0 : index
    %64 = vector.load %arg3[%c0_27, %c0_28] : memref<32x128xf32, #tpu.memory_space<vmem>>, vector<32x128xf32>
    %65 = arith.mulf %63, %64 : vector<32x128xf32>
    %c0_29 = arith.constant 0 : index
    %c0_30 = arith.constant 0 : index
    %66 = vector.load %arg4[%c0_29, %c0_30] : memref<32x128xf32, #tpu.memory_space<vmem>>, vector<32x128xf32>
    tpu.vector_store %arg4[%c0_29, %c0_30], %65 {strides = array<i32>} : memref<32x128xf32, #tpu.memory_space<vmem>>, vector<32x128xf32>,
    return
  }
}

</mosaic_0001>

<llo_original>
// kernel: model_wrapper_forward.1
$region0: #{model_wrapper_forward.1}
  #allocation0 [shape = 'u32[]', space=smem, size = 0x4, offset = 0x4, fixed_abs, tag = 'smem constant byte address 0x4 - core index']
  #allocation1 [shape = 'u32[144,128]{1,0:T(1,128)}', space=vmem, size = 0x12000, scoped, tag = 'internal scratch']
  #allocation2 [shape = 'bf16[32,4]{1,0:T(16,128)(2,1)}', space=vmem, size = 0x2000, scoped, tag = 'scratch operand']
  %s0 = inlined_call_operand.vmem [shape: f32[2,4,256], index: 0, kind: input, shape index: {}]
  %s1 = inlined_call_operand.vmem [shape: bf16[16,4], index: 1, kind: input, shape index: {}]
  %s2 = inlined_call_operand.vmem [shape: bf16[4,128], index: 2, kind: input, shape index: {}]
  %s3 = inlined_call_operand.vmem [shape: f32[32,128], index: 3, kind: input, shape index: {}]
  %s4 = inlined_call_operand.vmem [shape: f32[32,128], index: 4, kind: output, shape index: {}]
  %s5 = sld [smem:[#allocation0]]
  $region26: #{model_wrapper_forward.1} parent=0
    _
  %s7 = ssub.s32 1, %s5
  %s8 = scalar_select 0, %s7, %s5
  // Predicated region
  $region2: #{model_wrapper_forward.1} parent=0 // pred_check
    _
  $region3: #{model_wrapper_forward.1} parent=0 // pred_check_branch
    %10 = sbr.rel (0) target = $region5
  $region4: #{model_wrapper_forward.1} parent=0 // pred_region
    _
  $region5: #{model_wrapper_forward.1} parent=0 // pred_fallthru
    _
  // Predicated region
  $region6: #{model_wrapper_forward.1} parent=0 // pred_check
    _
  $region7: #{model_wrapper_forward.1} parent=0 // pred_check_branch
    %12 = sbr.rel (0) target = $region9
  $region8: #{model_wrapper_forward.1} parent=0 // pred_region
    _
  $region9: #{model_wrapper_forward.1} parent=0 // pred_fallthru
    _
  // Predicated region
  $region10: #{model_wrapper_forward.1} parent=0 // pred_check
    _
  $region11: #{model_wrapper_forward.1} parent=0 // pred_check_branch
    %14 = sbr.rel (0) target = $region13
  $region12: #{model_wrapper_forward.1} parent=0 // pred_region
    _
  $region13: #{model_wrapper_forward.1} parent=0 // pred_fallthru
    _
  // Predicated region
  $region14: #{model_wrapper_forward.1} parent=0 // pred_check
    _
  $region15: #{model_wrapper_forward.1} parent=0 // pred_check_branch
    %16 = sbr.rel (0) target = $region17
  $region16: #{model_wrapper_forward.1} parent=0 // pred_region
    _
  $region17: #{model_wrapper_forward.1} parent=0 // pred_fallthru
    _
  %v18 = vld [vmem:[%s0] sm:$0xff]
  %v20 = vcombine.high %v18, %v18
  %v22 = vpack.c.bf16 %v18, %v18
  %v23 = vpack.c.bf16 %v20, %v20
  %v24 = vld [vmem:[%s1] sm:$0xf]
  %v25 = vld [vmem:[%s1 + $0x4] sm:$0xf]
  %v28 = vunpack.c.l.b16 %v24
  %v29 = vunpack.c.l.b16 %v25
  %v30 = vpack.c.b16 %v29, %v28
  %vm31 = vcmask 31744
  %v33 = vsel %vm31, %v30, 0
  %vm35 = vcmask 1041408
  %v37 = vsel %vm35, %v22, 0
  %v40 = vsel %vm35, %v23, 0
  %42 = vmatprep.subr.bf16.mxu0 %v40
  %43 = vmatpush1.bf16.msra.mxu0 %v37
  %44 = vmatprep.subr.bf16.mxu0 0
  %45 = vmatpush1.bf16.msra.mxu0 0
  %46 = vmatprep.subr.bf16.mxu0 0
  %47 = vmatpush1.bf16.msra.mxu0 0
  %48 = vmatprep.subr.bf16.mxu0 0
  %49 = vmatpush1.bf16.msra.mxu0 0
  %50 = vmatprep.subr.bf16.mxu0 0
  %51 = vmatpush1.bf16.msra.mxu0 0
  %52 = vmatprep.subr.bf16.mxu0 0
  %53 = vmatpush1.bf16.msra.mxu0 0
  %54 = vmatprep.subr.bf16.mxu0 0
  %55 = vmatpush1.bf16.msra.mxu0 0
  %56 = vmatprep.subr.bf16.mxu0 0
  %57 = vmatpush1.bf16.msra.mxu0 0
  %58 = vmatprep.subr.bf16.mxu0 0
  %59 = vmatpush1.bf16.msra.mxu0 0
  %60 = vmatprep.subr.bf16.mxu0 0
  %61 = vmatpush1.bf16.msra.mxu0 0
  %62 = vmatprep.subr.bf16.mxu0 0
  %63 = vmatpush1.bf16.msra.mxu0 0
  %64 = vmatprep.subr.bf16.mxu0 0
  %65 = vmatpush1.bf16.msra.mxu0 0
  %66 = vmatprep.subr.bf16.mxu0 0
  %67 = vmatpush1.bf16.msra.mxu0 0
  %68 = vmatprep.subr.bf16.mxu0 0
  %69 = vmatpush1.bf16.msra.mxu0 0
  %70 = vmatprep.subr.bf16.mxu0 0
  %71 = vmatpush1.bf16.msra.mxu0 0
  %72 = vmatprep.subr.bf16.mxu0 0
  %73 = vmatpush1.bf16.msra.mxu0 0
  %74 = vmatprep.mubr.bf16.mxu0 0
  %75 = vmatmul.mubr.bf16.gmra.mrb[0].mxu0 %v33
  %v76 = vpop.f32.mrb[0].mxu0
  %v77 = vadd.f32 0.0, %v76
  %v78 = vpop.f32.mrb[0].mxu0
  %v79 = vadd.f32 0.0, %v78
  %v80 = vpop.f32.mrb[0].mxu0
  %v81 = vadd.f32 0.0, %v80
  %v82 = vpop.f32.mrb[0].mxu0
  %v83 = vadd.f32 0.0, %v82
  %84 = vdwg.mxu0
  %v85 = vmax.f32 %v77, %v79
  %86 = vmax.xlane.f32.xlu0 %v85
  %v87 = vpop.xlane.xlu0 %86
  %v88 = vmax.f32 %v81, %v83
  %89 = vmax.xlane.f32.xlu0 %v88
  %v90 = vpop.xlane.xlu0 %89
  %v91 = vsub.f32 %v77, %v87
  %v92 = vsub.f32 %v79, %v87
  %v93 = vsub.f32 %v81, %v90
  %v94 = vsub.f32 %v83, %v90
  %v95 = vmul.f32 %v91, 1.442695
  %v96 = vpow.pop %v95
  %v97 = vmul.f32 %v92, 1.442695
  %v98 = vpow.pop %v97
  %v99 = vmul.f32 %v93, 1.442695
  %v100 = vpow.pop %v99
  %v101 = vmul.f32 %v94, 1.442695
  %v102 = vpow.pop %v101
  %v103 = vadd.f32 %v96, %v98
  %104 = vadd.xlane.f32.xlu0 %v103
  %v105 = vpop.xlane.xlu0 %104
  %v106 = vadd.f32 %v100, %v102
  %107 = vadd.xlane.f32.xlu0 %v106
  %v108 = vpop.xlane.xlu0 %107
  %v109 = vrcp.pop %v105
  %v110 = vrcp.pop %v108
  %v111 = vmul.f32 %v96, %v109
  %v112 = vmul.f32 %v98, %v109
  %v113 = vmul.f32 %v100, %v110
  %v114 = vmul.f32 %v102, %v110
  %v115 = vpack.c.bf16 %v113, %v111
  %v116 = vpack.c.bf16 %v114, %v112
  %117 = vmatprep.subr.bf16.mxu0 %v23
  %118 = vmatpush1.bf16.xpose.msra.mxu0 %v22
  %119 = vmatprep.subr.bf16.mxu0 0
  %120 = vmatpush1.bf16.xpose.msra.mxu0 0
  %121 = vmatprep.subr.bf16.mxu0 0
  %122 = vmatpush1.bf16.xpose.msra.mxu0 0
  %123 = vmatprep.subr.bf16.mxu0 0
  %124 = vmatpush1.bf16.xpose.msra.mxu0 0
  %125 = vmatprep.subr.bf16.mxu0 0
  %126 = vmatpush1.bf16.xpose.msra.mxu0 0
  %127 = vmatprep.subr.bf16.mxu0 0
  %128 = vmatpush1.bf16.xpose.msra.mxu0 0
  %129 = vmatprep.subr.bf16.mxu0 0
  %130 = vmatpush1.bf16.xpose.msra.mxu0 0
  %131 = vmatprep.subr.bf16.mxu0 0
  %132 = vmatpush1.bf16.xpose.msra.mxu0 0
  %133 = vmatprep.subr.bf16.mxu0 0
  %134 = vmatpush1.bf16.xpose.msra.mxu0 0
  %135 = vmatprep.subr.bf16.mxu0 0
  %136 = vmatpush1.bf16.xpose.msra.mxu0 0
  %137 = vmatprep.subr.bf16.mxu0 0
  %138 = vmatpush1.bf16.xpose.msra.mxu0 0
  %139 = vmatprep.subr.bf16.mxu0 0
  %140 = vmatpush1.bf16.xpose.msra.mxu0 0
  %141 = vmatprep.subr.bf16.mxu0 0
  %142 = vmatpush1.bf16.xpose.msra.mxu0 0
  %143 = vmatprep.subr.bf16.mxu0 0
  %144 = vmatpush1.bf16.xpose.msra.mxu0 0
  %145 = vmatprep.subr.bf16.mxu0 0
  %146 = vmatpush1.bf16.xpose.msra.mxu0 0
  %147 = vmatprep.subr.bf16.mxu0 0
  %148 = vmatpush1.bf16.xpose.msra.mxu0 0
  %149 = vmatprep.mubr.bf16.mxu0 %v116
  %150 = vmatmul.mubr.bf16.gmra.mrb[0].mxu0 %v115
  %v151 = vpop.f32.mrb[0].mxu0
  %v152 = vadd.f32 0.0, %v151
  %v153 = vpop.f32.mrb[0].mxu0
  %v154 = vpop.f32.mrb[0].mxu0
  %v155 = vadd.f32 0.0, %v154
  %v156 = vpop.f32.mrb[0].mxu0
  %157 = vdwg.mxu0
  %v158 = vpack.c.bf16 %v155, %v152
  %159 = vst.msk [vmem:[#allocation2] sm:$0xff] %vm31, %v158
  %s160 = scalar_lea.vmem %s0, 8
  %v161 = vld [vmem:[%s160] sm:$0xff]
  %v163 = vcombine.high %v161, %v161
  %v165 = vpack.c.bf16 %v161, %v161
  %v166 = vpack.c.bf16 %v163, %v163
  %v167 = vld [vmem:[%s1] sm:$0xf]
  %v168 = vld [vmem:[%s1 + $0x4] sm:$0xf]
  %v171 = vunpack.c.l.b16 %v167
  %v172 = vunpack.c.l.b16 %v168
  %v173 = vpack.c.b16 %v172, %v171
  %v175 = vsel %vm31, %v173, 0
  %v178 = vsel %vm35, %v165, 0
  %v181 = vsel %vm35, %v166, 0
  %183 = vmatprep.subr.bf16.mxu0 %v181
  %184 = vmatpush1.bf16.msra.mxu0 %v178
  %185 = vmatprep.subr.bf16.mxu0 0
  %186 = vmatpush1.bf16.msra.mxu0 0
  %187 = vmatprep.subr.bf16.mxu0 0
  %188 = vmatpush1.bf16.msra.mxu0 0
  %189 = vmatprep.subr.bf16.mxu0 0
  %190 = vmatpush1.bf16.msra.mxu0 0
  %191 = vmatprep.subr.bf16.mxu0 0
  %192 = vmatpush1.bf16.msra.mxu0 0
  %193 = vmatprep.subr.bf16.mxu0 0
  %194 = vmatpush1.bf16.msra.mxu0 0
  %195 = vmatprep.subr.bf16.mxu0 0
  %196 = vmatpush1.bf16.msra.mxu0 0
  %197 = vmatprep.subr.bf16.mxu0 0
  %198 = vmatpush1.bf16.msra.mxu0 0
  %199 = vmatprep.subr.bf16.mxu0 0
  %200 = vmatpush1.bf16.msra.mxu0 0
  %201 = vmatprep.subr.bf16.mxu0 0
  %202 = vmatpush1.bf16.msra.mxu0 0
  %203 = vmatprep.subr.bf16.mxu0 0
  %204 = vmatpush1.bf16.msra.mxu0 0
  %205 = vmatprep.subr.bf16.mxu0 0
  %206 = vmatpush1.bf16.msra.mxu0 0
  %207 = vmatprep.subr.bf16.mxu0 0
  %208 = vmatpush1.bf16.msra.mxu0 0
  %209 = vmatprep.subr.bf16.mxu0 0
  %210 = vmatpush1.bf16.msra.mxu0 0
  %211 = vmatprep.subr.bf16.mxu0 0
  %212 = vmatpush1.bf16.msra.mxu0 0
  %213 = vmatprep.subr.bf16.mxu0 0
  %214 = vmatpush1.bf16.msra.mxu0 0
  %215 = vmatprep.mubr.bf16.mxu0 0
  %216 = vmatmul.mubr.bf16.gmra.mrb[0].mxu0 %v175
  %v217 = vpop.f32.mrb[0].mxu0
  %v218 = vadd.f32 0.0, %v217
  %v219 = vpop.f32.mrb[0].mxu0
  %v220 = vadd.f32 0.0, %v219
  %v221 = vpop.f32.mrb[0].mxu0
  %v222 = vadd.f32 0.0, %v221
  %v223 = vpop.f32.mrb[0].mxu0
  %v224 = vadd.f32 0.0, %v223
  %225 = vdwg.mxu0
  %v226 = vmax.f32 %v218, %v220
  %227 = vmax.xlane.f32.xlu0 %v226
  %v228 = vpop.xlane.xlu0 %227
  %v229 = vmax.f32 %v222, %v224
  %230 = vmax.xlane.f32.xlu0 %v229
  %v231 = vpop.xlane.xlu0 %230
  %v232 = vsub.f32 %v218, %v228
  %v233 = vsub.f32 %v220, %v228
  %v234 = vsub.f32 %v222, %v231
  %v235 = vsub.f32 %v224, %v231
  %v236 = vmul.f32 %v232, 1.442695
  %v237 = vpow.pop %v236
  %v238 = vmul.f32 %v233, 1.442695
  %v239 = vpow.pop %v238
  %v240 = vmul.f32 %v234, 1.442695
  %v241 = vpow.pop %v240
  %v242 = vmul.f32 %v235, 1.442695
  %v243 = vpow.pop %v242
  %v244 = vadd.f32 %v237, %v239
  %245 = vadd.xlane.f32.xlu0 %v244
  %v246 = vpop.xlane.xlu0 %245
  %v247 = vadd.f32 %v241, %v243
  %248 = vadd.xlane.f32.xlu0 %v247
  %v249 = vpop.xlane.xlu0 %248
  %v250 = vrcp.pop %v246
  %v251 = vrcp.pop %v249
  %v252 = vmul.f32 %v237, %v250
  %v253 = vmul.f32 %v239, %v250
  %v254 = vmul.f32 %v241, %v251
  %v255 = vmul.f32 %v243, %v251
  %v256 = vpack.c.bf16 %v254, %v252
  %v257 = vpack.c.bf16 %v255, %v253
  %258 = vmatprep.subr.bf16.mxu0 %v166
  %259 = vmatpush1.bf16.xpose.msra.mxu0 %v165
  %260 = vmatprep.subr.bf16.mxu0 0
  %261 = vmatpush1.bf16.xpose.msra.mxu0 0
  %262 = vmatprep.subr.bf16.mxu0 0
  %263 = vmatpush1.bf16.xpose.msra.mxu0 0
  %264 = vmatprep.subr.bf16.mxu0 0
  %265 = vmatpush1.bf16.xpose.msra.mxu0 0
  %266 = vmatprep.subr.bf16.mxu0 0
  %267 = vmatpush1.bf16.xpose.msra.mxu0 0
  %268 = vmatprep.subr.bf16.mxu0 0
  %269 = vmatpush1.bf16.xpose.msra.mxu0 0
  %270 = vmatprep.subr.bf16.mxu0 0
  %271 = vmatpush1.bf16.xpose.msra.mxu0 0
  %272 = vmatprep.subr.bf16.mxu0 0
  %273 = vmatpush1.bf16.xpose.msra.mxu0 0
  %274 = vmatprep.subr.bf16.mxu0 0
  %275 = vmatpush1.bf16.xpose.msra.mxu0 0
  %276 = vmatprep.subr.bf16.mxu0 0
  %277 = vmatpush1.bf16.xpose.msra.mxu0 0
  %278 = vmatprep.subr.bf16.mxu0 0
  %279 = vmatpush1.bf16.xpose.msra.mxu0 0
  %280 = vmatprep.subr.bf16.mxu0 0
  %281 = vmatpush1.bf16.xpose.msra.mxu0 0
  %282 = vmatprep.subr.bf16.mxu0 0
  %283 = vmatpush1.bf16.xpose.msra.mxu0 0
  %284 = vmatprep.subr.bf16.mxu0 0
  %285 = vmatpush1.bf16.xpose.msra.mxu0 0
  %286 = vmatprep.subr.bf16.mxu0 0
  %287 = vmatpush1.bf16.xpose.msra.mxu0 0
  %288 = vmatprep.subr.bf16.mxu0 0
  %289 = vmatpush1.bf16.xpose.msra.mxu0 0
  %290 = vmatprep.mubr.bf16.mxu0 %v257
  %291 = vmatmul.mubr.bf16.gmra.mrb[0].mxu0 %v256
  %v292 = vpop.f32.mrb[0].mxu0
  %v293 = vadd.f32 0.0, %v292
  %v294 = vpop.f32.mrb[0].mxu0
  %v295 = vpop.f32.mrb[0].mxu0
  %v296 = vadd.f32 0.0, %v295
  %v297 = vpop.f32.mrb[0].mxu0
  %298 = vdwg.mxu0
  %v299 = vpack.c.bf16 %v296, %v293
  %300 = vst.msk [vmem:[#allocation2 + $0x8] sm:$0xff] %vm31, %v299
  %v301 = vld [vmem:[#allocation2] sm:$0xff]
  %v302 = vld [vmem:[#allocation2 + $0x8] sm:$0xff]
  %v303 = vld [vmem:[%s2] sm:$0x3]
  %v305 = vsel %vm31, %v301, 0
  %v308 = vsel %vm31, %v302, 0
  %v311 = vsel %vm35, %v303, 0
  %313 = vmatprep.subr.bf16.mxu0 0
  %314 = vmatpush1.bf16.msra.mxu0 %v311
  %315 = vmatprep.subr.bf16.mxu0 0
  %316 = vmatpush1.bf16.msra.mxu0 0
  %317 = vmatprep.subr.bf16.mxu0 0
  %318 = vmatpush1.bf16.msra.mxu0 0
  %319 = vmatprep.subr.bf16.mxu0 0
  %320 = vmatpush1.bf16.msra.mxu0 0
  %321 = vmatprep.subr.bf16.mxu0 0
  %322 = vmatpush1.bf16.msra.mxu0 0
  %323 = vmatprep.subr.bf16.mxu0 0
  %324 = vmatpush1.bf16.msra.mxu0 0
  %325 = vmatprep.subr.bf16.mxu0 0
  %326 = vmatpush1.bf16.msra.mxu0 0
  %327 = vmatprep.subr.bf16.mxu0 0
  %328 = vmatpush1.bf16.msra.mxu0 0
  %329 = vmatprep.subr.bf16.mxu0 0
  %330 = vmatpush1.bf16.msra.mxu0 0
  %331 = vmatprep.subr.bf16.mxu0 0
  %332 = vmatpush1.bf16.msra.mxu0 0
  %333 = vmatprep.subr.bf16.mxu0 0
  %334 = vmatpush1.bf16.msra.mxu0 0
  %335 = vmatprep.subr.bf16.mxu0 0
  %336 = vmatpush1.bf16.msra.mxu0 0
  %337 = vmatprep.subr.bf16.mxu0 0
  %338 = vmatpush1.bf16.msra.mxu0 0
  %339 = vmatprep.subr.bf16.mxu0 0
  %340 = vmatpush1.bf16.msra.mxu0 0
  %341 = vmatprep.subr.bf16.mxu0 0
  %342 = vmatpush1.bf16.msra.mxu0 0
  %343 = vmatprep.subr.bf16.mxu0 0
  %344 = vmatpush1.bf16.msra.mxu0 0
  %345 = vmatprep.mubr.bf16.mxu0 0
  %346 = vmatmul.mubr.bf16.gmra.mrb[0].mxu0 %v305
  %v347 = vpop.f32.mrb[0].mxu0
  %v348 = vadd.f32 0.0, %v347
  %v349 = vpop.f32.mrb[0].mxu0
  %v350 = vpop.f32.mrb[0].mxu0
  %v351 = vadd.f32 0.0, %v350
  %v352 = vpop.f32.mrb[0].mxu0
  %353 = vmatprep.mubr.bf16.mxu0 0
  %354 = vmatmul.mubr.bf16.gmra.mrb[0].mxu0 %v308
  %v355 = vpop.f32.mrb[0].mxu0
  %v356 = vadd.f32 0.0, %v355
  %v357 = vpop.f32.mrb[0].mxu0
  %v358 = vpop.f32.mrb[0].mxu0
  %v359 = vadd.f32 0.0, %v358
  %v360 = vpop.f32.mrb[0].mxu0
  %361 = vdwg.mxu0
  %v362 = vxor.u32 %v348, 2147483648
  %v363 = vxor.u32 %v351, 2147483648
  %v364 = vxor.u32 %v356, 2147483648
  %v365 = vxor.u32 %v359, 2147483648
  %v366 = vmul.f32 %v362, 1.442695
  %v367 = vpow.pop %v366
  %v368 = vmul.f32 %v363, 1.442695
  %v369 = vpow.pop %v368
  %v370 = vmul.f32 %v364, 1.442695
  %v371 = vpow.pop %v370
  %v372 = vmul.f32 %v365, 1.442695
  %v373 = vpow.pop %v372
  %v374 = vadd.f32 %v367, 1.0
  %v375 = vadd.f32 %v369, 1.0
  %v376 = vadd.f32 %v371, 1.0
  %v377 = vadd.f32 %v373, 1.0
  %v378 = vrcp.pop %v374
  %v379 = vmul.f32 1.0, %v378
  %v380 = vrcp.pop %v375
  %v381 = vmul.f32 1.0, %v380
  %v382 = vrcp.pop %v376
  %v383 = vmul.f32 1.0, %v382
  %v384 = vrcp.pop %v377
  %v385 = vmul.f32 1.0, %v384
  %v386 = vlaneseq
  %v387 = vand.u32 %v386, 127
  %vm388 = vcmp.lt.s32.totalorder %v387, 8
  %vm389 = vcmp.ge.s32.totalorder %v387, 8
  %vm390 = vcmp.lt.s32.totalorder %v387, 10
  %vm391 = vmand %vm389, %vm390
  %392 = vrot.lane.b32.xlu0 %v379, 2
  %v393 = vpop.permute.xlu0 %392
  %394 = vrot.lane.b32.xlu0 %v381, 2
  %v395 = vpop.permute.xlu0 %394
  %396 = vrot.lane.b32.xlu0 %v383, 2
  %v397 = vpop.permute.xlu0 %396
  %398 = vrot.lane.b32.xlu0 %v385, 2
  %v399 = vpop.permute.xlu0 %398
  %400 = vrot.lane.b32.xlu0 %v379, 126
  %v401 = vpop.permute.xlu0 %400
  %402 = vrot.lane.b32.xlu0 %v381, 126
  %v403 = vpop.permute.xlu0 %402
  %404 = vrot.lane.b32.xlu0 %v383, 126
  %v405 = vpop.permute.xlu0 %404
  %406 = vrot.lane.b32.xlu0 %v385, 126
  %v407 = vpop.permute.xlu0 %406
  %v408 = vmul.f32 %v401, 0.5
  %v409 = vmul.f32 %v403, 0.5
  %v410 = vmul.f32 %v405, 0.5
  %v411 = vmul.f32 %v407, 0.5
  %v412 = vsub.f32 %v379, %v408
  %v413 = vsub.f32 %v381, %v409
  %v414 = vsub.f32 %v383, %v410
  %v415 = vsub.f32 %v385, %v411
  %v416 = vmul.f32 %v379, 0.5
  %v417 = vmul.f32 %v381, 0.5
  %v418 = vmul.f32 %v383, 0.5
  %v419 = vmul.f32 %v385, 0.5
  %v420 = vadd.f32 %v393, %v416
  %v421 = vadd.f32 %v395, %v417
  %v422 = vadd.f32 %v397, %v418
  %v423 = vadd.f32 %v399, %v419
  %v424 = vsel %vm391, %v412, %v420
  %v425 = vsel %vm391, %v413, %v421
  %v426 = vsel %vm391, %v414, %v422
  %v427 = vsel %vm391, %v415, %v423
  %v428 = vsel %vm388, %v379, %v424
  %v429 = vsel %vm388, %v381, %v425
  %v430 = vsel %vm388, %v383, %v426
  %v431 = vsel %vm388, %v385, %v427
  %v432 = vld [vmem:[%s3] sm:$0xff]
  %v433 = vld [vmem:[%s3 + $0x8] sm:$0xff]
  %v434 = vld [vmem:[%s3 + $0x10] sm:$0xff]
  %v435 = vld [vmem:[%s3 + $0x18] sm:$0xff]
  %v436 = vmul.f32 %v428, %v432
  %v437 = vmul.f32 %v429, %v433
  %v438 = vmul.f32 %v430, %v434
  %v439 = vmul.f32 %v431, %v435
  %440 = vst [vmem:[%s4] sm:$0xff] %v436
  %441 = vst [vmem:[%s4 + $0x8] sm:$0xff] %v437
  %442 = vst [vmem:[%s4 + $0x10] sm:$0xff] %v438
  %443 = vst [vmem:[%s4 + $0x18] sm:$0xff] %v439
  // Predicated region
  $region18: #{model_wrapper_forward.1} parent=0 // pred_check
    _
  $region19: #{model_wrapper_forward.1} parent=0 // pred_check_branch
    %445 = sbr.rel (0) target = $region21
  $region20: #{model_wrapper_forward.1} parent=0 // pred_region
    _
  $region21: #{model_wrapper_forward.1} parent=0 // pred_fallthru
    _
  // Predicated region
  $region22: #{model_wrapper_forward.1} parent=0 // pred_check
    _
  $region23: #{model_wrapper_forward.1} parent=0 // pred_check_branch
    %447 = sbr.rel (0) target = $region25
  $region24: #{model_wrapper_forward.1} parent=0 // pred_region
    _
  $region25: #{model_wrapper_forward.1} parent=0 // pred_fallthru
    _

</llo_original>
